<compile_context>
chip_gen: v6e
topology: v6e:2x2x1
jax: 0.10.0
libtpu: 0.0.40
codegen_flags: <defaults>
</compile_context>

<pallas_src>
import functools

import jax
import jax.numpy as jnp
import numpy as np
from jax.experimental import pallas as pl
from jax.experimental.pallas import tpu as pltpu


# ---------------------------------------------------------------------------
# Fused Pallas kernel (one batch tile per grid step)
# ---------------------------------------------------------------------------
def coembed_kernel(drug_ref, target_ref, dw_ref, db_ref, tw_plm_ref,
                   fs_tab_ref, tb_ref, o_ref, *, target_dim, n_pool, vocab):
    """One batch tile of the SimpleCoembedding_FoldSeekX forward.

    drug_ref   : [TB, Dd]        f32  drug features
    target_ref : [TB, Dt + Np]   f32  raw target (PLM embedding | fs indices)
    dw_ref     : [Dd, L]         bf16 drug Linear weight, transposed
    db_ref     : [1, L]          f32  drug Linear bias
    tw_plm_ref : [Dt, L]         bf16 target Linear weight (PLM cols), transposed
    fs_tab_ref : [V, L]          f32  prefused  emb @ W_t[:, Dt:].T
    tb_ref     : [1, L]          f32  target Linear bias
    o_ref      : [TB, 1]         f32  cosine similarity output
    """
    f32 = jnp.float32
    bf16 = jnp.bfloat16

    # ---- drug projection: ReLU(drug @ W_d^T + b_d) --------------------------
    drug_proj = jnp.maximum(
        jnp.dot(drug_ref[...].astype(bf16), dw_ref[...],
                preferred_element_type=f32) + db_ref[...], 0.0)        # [TB, L]

    # ---- split the raw target inside the kernel ------------------------------
    plm = target_ref[:, :target_dim]                                   # [TB, Dt]
    fs_idx = target_ref[:, target_dim:].astype(jnp.int32)              # [TB, Np]

    # ---- foldseek mean-pool, gather-free, as counts @ prefused table ---------
    #   fs_mean @ W_fs^T = (1/Np) * counts @ (emb @ W_fs^T) = (counts/Np) @ fs_table
    v_iota = jax.lax.broadcasted_iota(jnp.int32, (1, 1, vocab), 2)     # [1,1,V]
    onehot = (fs_idx[:, :, None] == v_iota).astype(f32)                # [TB,Np,V]
    counts = jnp.sum(onehot, axis=1) * (1.0 / n_pool)                  # [TB, V]

    # ---- target projection: ReLU([plm | fs_mean] @ W_t^T + b_t) --------------
    t_lin = (jnp.dot(plm.astype(bf16), tw_plm_ref[...],
                     preferred_element_type=f32)
             + jnp.dot(counts, fs_tab_ref[...], preferred_element_type=f32)
             + tb_ref[...])
    target_proj = jnp.maximum(t_lin, 0.0)                              # [TB, L]

    # ---- cosine similarity (PyTorch per-vector eps clamp, eps=1e-8) ---------
    num = jnp.sum(drug_proj * target_proj, axis=-1, keepdims=True)     # [TB, 1]
    nd2 = jnp.sum(drug_proj * drug_proj, axis=-1, keepdims=True)
    nt2 = jnp.sum(target_proj * target_proj, axis=-1, keepdims=True)
    eps2 = 1e-16                                                       # (1e-8)^2
    inv = (jax.lax.rsqrt(jnp.maximum(nd2, eps2))
           * jax.lax.rsqrt(jnp.maximum(nt2, eps2)))
    o_ref[...] = (num * inv).astype(o_ref.dtype)


# ---------------------------------------------------------------------------
# Wrapper
# ---------------------------------------------------------------------------
@functools.partial(jax.jit, static_argnames=("target_shape", "block_b"))
def coembed_forward(prepared, drug, target, *, target_shape, block_b=128):
    """drug: [B, Dd]; target: [B, Dt + Np] (PLM embedding | foldseek indices)."""
    B, Dd = drug.shape
    total = target.shape[1]
    n_pool = total - target_shape
    L = prepared["drug_b"].shape[1]
    V = prepared["fs_table"].shape[0]

    # Batch tile: sublane-aligned (multiple of 8 for f32), capped at B.
    tb = max(8, (min(block_b, B) // 8) * 8)
    grid_n = pl.cdiv(B, tb)
    Bp = grid_n * tb
    if Bp != B:  # pad last tile; padded rows are discarded after the call
        drug = jnp.pad(drug, ((0, Bp - B), (0, 0)))
        target = jnp.pad(target, ((0, Bp - B), (0, 0)))

    kernel = functools.partial(coembed_kernel, target_dim=target_shape,
                               n_pool=n_pool, vocab=V)

    out = pl.pallas_call(
        kernel,
        out_shape=jax.ShapeDtypeStruct((Bp, 1), jnp.float32),
        grid=(grid_n,),
        in_specs=[
            pl.BlockSpec((tb, Dd), lambda i: (i, 0)),            # drug tile
            pl.BlockSpec((tb, total), lambda i: (i, 0)),         # raw target tile
            pl.BlockSpec((Dd, L), lambda i: (0, 0)),             # drug_w_t (resident)
            pl.BlockSpec((1, L), lambda i: (0, 0)),              # drug_b
            pl.BlockSpec((target_shape, L), lambda i: (0, 0)),   # target_w_plm_t
            pl.BlockSpec((V, L), lambda i: (0, 0)),              # prefused fs table
            pl.BlockSpec((1, L), lambda i: (0, 0)),              # target_b
        ],
        out_specs=pl.BlockSpec((tb, 1), lambda i: (i, 0)),
        compiler_params=pltpu.CompilerParams(
            dimension_semantics=("parallel",),          # v7x: 2 TCs split batch
            vmem_limit_bytes=64 * 1024 * 1024),          # headroom for v5e weights
    )(drug, target,
      prepared["drug_w_t"], prepared["drug_b"],
      prepared["target_w_plm_t"], prepared["fs_table"], prepared["target_b"])

    return out[:B, 0]                                    # .squeeze() -> [B]


# ---------------------------------------------------------------------------
# Parameter init (PyTorch layout) + one-time kernel-layout preparation
# ---------------------------------------------------------------------------
def init_params(key, drug_shape, target_shape, latent_dim, fs_dim,
                vocab=22, padding_idx=0):
    k = jax.random.split(key, 5)

    def xavier_normal(kk, shape):              # nn.init.xavier_normal_
        fan_out, fan_in = shape
        std = (2.0 / (fan_in + fan_out)) ** 0.5
        return std * jax.random.normal(kk, shape, jnp.float32)

    def linear_bias(kk, fan_in, out):          # default nn.Linear bias init
        bound = 1.0 / (fan_in ** 0.5)
        return jax.random.uniform(kk, (out,), jnp.float32, -bound, bound)

    emb = jax.random.normal(k[0], (vocab, fs_dim), jnp.float32)
    emb = emb.at[padding_idx].set(0.0)         # nn.Embedding padding_idx row

    return {
        "emb": emb,                                               # [V, Dfs]
        "drug_w": xavier_normal(k[1], (latent_dim, drug_shape)),  # [L, Dd]
        "drug_b": linear_bias(k[2], drug_shape, latent_dim),      # [L]
        "target_w": xavier_normal(k[3], (latent_dim, target_shape + fs_dim)),
        "target_b": linear_bias(k[4], target_shape + fs_dim, latent_dim),
    }


def prepare_params(params, target_shape):
    """One-time re-layout / prefusion to the shapes the kernel wants."""
    tw = params["target_w"]                                   # [L, Dt + Dfs]
    w_fs = tw[:, target_shape:]                               # [L, Dfs]
    # Prefused foldseek table: emb @ W_fs^T  -> [V, L]  (f32 for accuracy; tiny)
    fs_table = params["emb"] @ w_fs.T
    return {
        "drug_w_t": jnp.asarray(params["drug_w"].T, jnp.bfloat16),        # [Dd, L]
        "drug_b": jnp.asarray(params["drug_b"][None, :], jnp.float32),    # [1, L]
        "target_w_plm_t": jnp.asarray(tw[:, :target_shape].T, jnp.bfloat16),  # [Dt, L]
        "fs_table": jnp.asarray(fs_table, jnp.float32),                   # [V, L]
        "target_b": jnp.asarray(params["target_b"][None, :], jnp.float32),
    }


# ---------------------------------------------------------------------------
# Pure-JAX f32 reference (mirrors PyTorch semantics) for correctness check
# ---------------------------------------------------------------------------
def reference_forward(params, drug, target, target_shape):
    plm = target[:, :target_shape]
    idx = target[:, target_shape:].astype(jnp.int32)
    fs_emb = params["emb"][idx]                               # [B, Np, Dfs]
    fs_mean = fs_emb.mean(axis=1)                             # [B, Dfs]
    full = jnp.concatenate([plm, fs_mean], axis=1)            # [B, Dt+Dfs]
    dp = jax.nn.relu(drug @ params["drug_w"].T + params["drug_b"])
    tp = jax.nn.relu(full @ params["target_w"].T + params["target_b"])
    num = jnp.sum(dp * tp, axis=1)
    nd = jnp.maximum(jnp.linalg.norm(dp, axis=1), 1e-8)
    nt = jnp.maximum(jnp.linalg.norm(tp, axis=1), 1e-8)
    return num / (nd * nt)


# ---------------------------------------------------------------------------
if __name__ == "__main__":
    # Small shapes consistent with the module (scaled down from
    # drug=2048 / target=1024 / latent=1024 / foldseek=512).
    B = 20                        # deliberately NOT a multiple of BLOCK_B
    DRUG_SHAPE = 256
    TARGET_SHAPE = 128
    FS_DIM = 128
    LATENT = 128
    N_POOL = 16                   # number of foldseek indices appended to target
    VOCAB = 22
    FOLDSEEK_MISSING_IDX = 0
    BLOCK_B = 8                   # small so the demo exercises a multi-step grid

    key = jax.random.PRNGKey(0)
    k_params, k_drug, k_plm, k_idx = jax.random.split(key, 4)

    params = init_params(k_params, DRUG_SHAPE, TARGET_SHAPE, LATENT, FS_DIM,
                         vocab=VOCAB, padding_idx=FOLDSEEK_MISSING_IDX)
    prepared = prepare_params(params, TARGET_SHAPE)

    drug = jax.random.normal(k_drug, (B, DRUG_SHAPE), jnp.float32)
    plm_part = jax.random.normal(k_plm, (B, TARGET_SHAPE), jnp.float32)
    fs_idx = jax.random.randint(k_idx, (B, N_POOL), 0, VOCAB)   # includes padding 0s
    target = jnp.concatenate([plm_part, fs_idx.astype(jnp.float32)], axis=1)

    out = coembed_forward(prepared, drug, target,
                          target_shape=TARGET_SHAPE, block_b=BLOCK_B)
    out = jax.block_until_ready(out)
    assert out.shape == (B,), out.shape

    ref = reference_forward(params, drug, target, TARGET_SHAPE)
    # Tolerance accounts for bf16 MXU operands + prefused fs accumulation order.
    np.testing.assert_allclose(np.asarray(out), np.asarray(ref),
                               atol=2e-2, rtol=2e-2)
    print("KERNEL_OK")
</pallas_src>

<mosaic_0001>
module attributes {stable_mosaic.version = 11 : i64} {
  func.func @coembed_kernel(%arg0: i32, %arg1: memref<8x256xf32, #tpu.memory_space<vmem>>, %arg2: memref<8x144xf32, #tpu.memory_space<vmem>>, %arg3: memref<256x128xbf16, #tpu.memory_space<vmem>>, %arg4: memref<1x128xf32, #tpu.memory_space<vmem>>, %arg5: memref<128x128xbf16, #tpu.memory_space<vmem>>, %arg6: memref<22x128xf32, #tpu.memory_space<vmem>>, %arg7: memref<1x128xf32, #tpu.memory_space<vmem>>, %arg8: memref<8x1xf32, #tpu.memory_space<vmem>>) attributes {dimension_semantics = [#tpu.dimension_semantics<parallel>], iteration_bounds = array<i64: 3>, scalar_prefetch = 0 : i64, scratch_operands = 0 : i64, tpu.core_type = #tpu.core_type<tc>, window_params = [{transform_indices = @transform_0, window_bounds = array<i64: 8, 256>}, {transform_indices = @transform_1, window_bounds = array<i64: 8, 144>}, {pipeline_mode = #tpu.pipeline_mode<synchronous>, transform_indices = @transform_2, window_bounds = array<i64: 256, 128>}, {pipeline_mode = #tpu.pipeline_mode<synchronous>, transform_indices = @transform_3, window_bounds = array<i64: 1, 128>}, {pipeline_mode = #tpu.pipeline_mode<synchronous>, transform_indices = @transform_4, window_bounds = array<i64: 128, 128>}, {pipeline_mode = #tpu.pipeline_mode<synchronous>, transform_indices = @transform_5, window_bounds = array<i64: 22, 128>}, {pipeline_mode = #tpu.pipeline_mode<synchronous>, transform_indices = @transform_6, window_bounds = array<i64: 1, 128>}, {transform_indices = @transform_7, window_bounds = array<i64: 8, 1>}]} {
    %c0 = arith.constant 0 : index
    %c0_0 = arith.constant 0 : index
    %0 = vector.load %arg1[%c0, %c0_0] : memref<8x256xf32, #tpu.memory_space<vmem>>, vector<8x256xf32>
    %1 = arith.truncf %0 : vector<8x256xf32> to vector<8x256xbf16>
    %c0_1 = arith.constant 0 : index
    %c0_2 = arith.constant 0 : index
    %2 = vector.load %arg3[%c0_1, %c0_2] : memref<256x128xbf16, #tpu.memory_space<vmem>>, vector<256x128xbf16>
    %cst = arith.constant dense<0.000000e+00> : vector<8x128xf32>
    %3 = tpu.matmul %1, %2, %cst {dimension_numbers = #tpu.dot_dimension_numbers<[1], [0], [0], [1], [0, 0, 1, 1], [], []>} : vector<8x256xbf16>, vector<256x128xbf16>, vector<8x128xf32> -> vector<8x128xf32>
    %c0_3 = arith.constant 0 : index
    %c0_4 = arith.constant 0 : index
    %4 = vector.load %arg4[%c0_3, %c0_4] : memref<1x128xf32, #tpu.memory_space<vmem>>, vector<1x128xf32>
    %5 = vector.broadcast %4 : vector<1x128xf32> to vector<8x128xf32>
    %6 = arith.addf %3, %5 : vector<8x128xf32>
    %cst_5 = arith.constant 0.000000e+00 : f32
    %7 = vector.broadcast %cst_5 : f32 to vector<8x128xf32>
    %8 = arith.maximumf %6, %7 : vector<8x128xf32>
    %c0_6 = arith.constant 0 : index
    %c0_7 = arith.constant 0 : index
    %9 = vector.load %arg2[%c0_6, %c0_7] : memref<8x144xf32, #tpu.memory_space<vmem>>, vector<8x128xf32>
    %c0_8 = arith.constant 0 : index
    %c128 = arith.constant 128 : index
    %10 = vector.load %arg2[%c0_8, %c128] : memref<8x144xf32, #tpu.memory_space<vmem>>, vector<8x16xf32>
    %11 = arith.fptosi %10 : vector<8x16xf32> to vector<8x16xi32>
    %12 = tpu.iota {dimensions = array<i32: 2>} : vector<1x1x22xi32>
    %13 = vector.shape_cast %11 : vector<8x16xi32> to vector<8x16x1xi32>
    %14 = vector.broadcast %13 : vector<8x16x1xi32> to vector<8x16x22xi32>
    %15 = vector.broadcast %12 : vector<1x1x22xi32> to vector<8x16x22xi32>
    %16 = arith.cmpi eq, %14, %15 : vector<8x16x22xi32>
    %17 = arith.extui %16 : vector<8x16x22xi1> to vector<8x16x22xi32>
    %18 = arith.sitofp %17 : vector<8x16x22xi32> to vector<8x16x22xf32>
    %cst_9 = arith.constant dense<0.000000e+00> : vector<8x22xf32>
    %19 = vector.multi_reduction <add>, %18, %cst_9 [1] : vector<8x16x22xf32> to vector<8x22xf32>
    %cst_10 = arith.constant 6.250000e-02 : f32
    %20 = vector.broadcast %cst_10 : f32 to vector<8x22xf32>
    %21 = arith.mulf %19, %20 : vector<8x22xf32>
    %22 = arith.truncf %9 : vector<8x128xf32> to vector<8x128xbf16>
    %c0_11 = arith.constant 0 : index
    %c0_12 = arith.constant 0 : index
    %23 = vector.load %arg5[%c0_11, %c0_12] : memref<128x128xbf16, #tpu.memory_space<vmem>>, vector<128x128xbf16>
    %cst_13 = arith.constant dense<0.000000e+00> : vector<8x128xf32>
    %24 = tpu.matmul %22, %23, %cst_13 {dimension_numbers = #tpu.dot_dimension_numbers<[1], [0], [0], [1], [0, 0, 1, 1], [], []>} : vector<8x128xbf16>, vector<128x128xbf16>, vector<8x128xf32> -> vector<8x128xf32>
    %c0_14 = arith.constant 0 : index
    %c0_15 = arith.constant 0 : index
    %25 = vector.load %arg6[%c0_14, %c0_15] : memref<22x128xf32, #tpu.memory_space<vmem>>, vector<22x128xf32>
    %cst_16 = arith.constant dense<0.000000e+00> : vector<8x128xf32>
    %26 = tpu.matmul %21, %25, %cst_16 {dimension_numbers = #tpu.dot_dimension_numbers<[1], [0], [0], [1], [0, 0, 1, 1], [], []>} : vector<8x22xf32>, vector<22x128xf32>, vector<8x128xf32> -> vector<8x128xf32>
    %27 = arith.addf %24, %26 : vector<8x128xf32>
    %c0_17 = arith.constant 0 : index
    %c0_18 = arith.constant 0 : index
    %28 = vector.load %arg7[%c0_17, %c0_18] : memref<1x128xf32, #tpu.memory_space<vmem>>, vector<1x128xf32>
    %29 = vector.broadcast %28 : vector<1x128xf32> to vector<8x128xf32>
    %30 = arith.addf %27, %29 : vector<8x128xf32>
    %cst_19 = arith.constant 0.000000e+00 : f32
    %31 = vector.broadcast %cst_19 : f32 to vector<8x128xf32>
    %32 = arith.maximumf %30, %31 : vector<8x128xf32>
    %33 = arith.mulf %8, %32 : vector<8x128xf32>
    %cst_20 = arith.constant dense<0.000000e+00> : vector<8xf32>
    %34 = vector.multi_reduction <add>, %33, %cst_20 [1] : vector<8x128xf32> to vector<8xf32>
    %35 = vector.shape_cast %34 : vector<8xf32> to vector<8x1xf32>
    %36 = arith.mulf %8, %8 : vector<8x128xf32>
    %cst_21 = arith.constant dense<0.000000e+00> : vector<8xf32>
    %37 = vector.multi_reduction <add>, %36, %cst_21 [1] : vector<8x128xf32> to vector<8xf32>
    %38 = vector.shape_cast %37 : vector<8xf32> to vector<8x1xf32>
    %39 = arith.mulf %32, %32 : vector<8x128xf32>
    %cst_22 = arith.constant dense<0.000000e+00> : vector<8xf32>
    %40 = vector.multi_reduction <add>, %39, %cst_22 [1] : vector<8x128xf32> to vector<8xf32>
    %41 = vector.shape_cast %40 : vector<8xf32> to vector<8x1xf32>
    %cst_23 = arith.constant 1.000000e-16 : f32
    %42 = vector.broadcast %cst_23 : f32 to vector<8x1xf32>
    %43 = arith.maximumf %38, %42 : vector<8x1xf32>
    %44 = math.rsqrt %43 : vector<8x1xf32>
    %cst_24 = arith.constant 1.000000e-16 : f32
    %45 = vector.broadcast %cst_24 : f32 to vector<8x1xf32>
    %46 = arith.maximumf %41, %45 : vector<8x1xf32>
    %47 = math.rsqrt %46 : vector<8x1xf32>
    %48 = arith.mulf %44, %47 : vector<8x1xf32>
    %49 = arith.mulf %35, %48 : vector<8x1xf32>
    %c0_25 = arith.constant 0 : index
    %c0_26 = arith.constant 0 : index
    %50 = vector.load %arg8[%c0_25, %c0_26] : memref<8x1xf32, #tpu.memory_space<vmem>>, vector<8x1xf32>
    tpu.vector_store %arg8[%c0_25, %c0_26], %49 {strides = array<i32>} : memref<8x1xf32, #tpu.memory_space<vmem>>, vector<8x1xf32>,
    return
  }
  func.func @transform_0(%arg0: i32) -> (i32, i32) {
    %c0_i32 = arith.constant 0 : i32
    %c0_i32_0 = arith.constant 0 : i32
    return %arg0, %c0_i32 : i32, i32
  }
  func.func @transform_1(%arg0: i32) -> (i32, i32) {
    %c0_i32 = arith.constant 0 : i32
    %c0_i32_0 = arith.constant 0 : i32
    return %arg0, %c0_i32 : i32, i32
  }
  func.func @transform_2(%arg0: i32) -> (i32, i32) {
    %c0_i32 = arith.constant 0 : i32
    %c0_i32_0 = arith.constant 0 : i32
    %c0_i32_1 = arith.constant 0 : i32
    return %c0_i32, %c0_i32_0 : i32, i32
  }
  func.func @transform_3(%arg0: i32) -> (i32, i32) {
    %c0_i32 = arith.constant 0 : i32
    %c0_i32_0 = arith.constant 0 : i32
    %c0_i32_1 = arith.constant 0 : i32
    return %c0_i32, %c0_i32_0 : i32, i32
  }
  func.func @transform_4(%arg0: i32) -> (i32, i32) {
    %c0_i32 = arith.constant 0 : i32
    %c0_i32_0 = arith.constant 0 : i32
    %c0_i32_1 = arith.constant 0 : i32
    return %c0_i32, %c0_i32_0 : i32, i32
  }
  func.func @transform_5(%arg0: i32) -> (i32, i32) {
    %c0_i32 = arith.constant 0 : i32
    %c0_i32_0 = arith.constant 0 : i32
    %c0_i32_1 = arith.constant 0 : i32
    return %c0_i32, %c0_i32_0 : i32, i32
  }
  func.func @transform_6(%arg0: i32) -> (i32, i32) {
    %c0_i32 = arith.constant 0 : i32
    %c0_i32_0 = arith.constant 0 : i32
    %c0_i32_1 = arith.constant 0 : i32
    return %c0_i32, %c0_i32_0 : i32, i32
  }
  func.func @transform_7(%arg0: i32) -> (i32, i32) {
    %c0_i32 = arith.constant 0 : i32
    %c0_i32_0 = arith.constant 0 : i32
    return %arg0, %c0_i32 : i32, i32
  }
}

</mosaic_0001>

<llo_original>
// kernel: coembed_forward.1
$region0: #{coembed_forward.1}
  #allocation0 [shape = 'u32[]', space=smem, size = 0x4, offset = 0x4, fixed_abs, tag = 'smem constant byte address 0x4 - core index']
  #allocation1 [shape = 'u32[144,128]{1,0:T(1,128)}', space=vmem, size = 0x12000, scoped, tag = 'internal scratch']
  %s0 = inlined_call_operand.vmem [shape: f32[24,256], index: 0, kind: input, shape index: {}]
  %s1 = inlined_call_operand.vmem [shape: f32[24,144], index: 1, kind: input, shape index: {}]
  %s2 = inlined_call_operand.vmem [shape: bf16[256,128], index: 2, kind: input, shape index: {}]
  %s3 = inlined_call_operand.vmem [shape: f32[1,128], index: 3, kind: input, shape index: {}]
  %s4 = inlined_call_operand.vmem [shape: bf16[128,128], index: 4, kind: input, shape index: {}]
  %s5 = inlined_call_operand.hbm [shape: f32[22,128], index: 5, kind: input, shape index: {}]
  %s6 = inlined_call_operand.vmem [shape: f32[1,128], index: 6, kind: input, shape index: {}]
  %s7 = inlined_call_operand.vmem [shape: f32[24,1], index: 7, kind: output, shape index: {}]
  %s8 = sld [smem:[#allocation0]]
  $region65: #{coembed_forward.1} parent=0
    _
  %s10 = ssub.s32 1, %s8
  %s11 = scalar_select 0, %s10, %s8
  $region1: #{coembed_forward.1} parent=0
    #allocation2 [shape = 'u8[12288]{0}', space=vmem, size = 0x3000, scoped, tag = 'input window, operand 5, single buffered']
    #allocation3 [shape = 's32[2]{0}', space=sflag, size = 0x8, scoped, tag = 'scoped memory for coembed_forward.1']
    %12 = vsyncpa [#allocation3], 0
    loop: start=0, step=1, limit=5
    $region2: #{coembed_forward.1} parent=1 // loop_pre_header
      _
    $region3: #{coembed_forward.1} parent=1 // loop_header
      %s14 = sphi 0, %s18
      %p15 = scmp.ge.s32.totalorder %s14, 5
      %s24 = sphi 0, %s26
      %s27 = sphi 0, %s24
      %s28 = sphi 0, %s27
      %s44 = sphi 0, %s28
      %s50 = sphi 0, %s52
      %s53 = sphi 0, %s50
      %s54 = sphi 0, %s53
      %s70 = sphi 0, %s54
      %s74 = sphi 0, %s74
      %s76 = sphi 0, %s74
      %s77 = sphi 0, %s76
      %s91 = sphi 0, %s77
      %s95 = sphi 0, %s95
      %s97 = sphi 0, %s95
      %s98 = sphi 0, %s97
      %s112 = sphi 0, %s98
      %s116 = sphi 0, %s116
      %s118 = sphi 0, %s116
      %s119 = sphi 0, %s118
      %s133 = sphi 0, %s119
      %s137 = sphi 0, %s137
      %s139 = sphi 0, %s137
      %s140 = sphi 0, %s139
      %s154 = sphi 0, %s140
      %s158 = sphi 0, %s158
      %s160 = sphi 0, %s158
      %s161 = sphi 0, %s160
      %s175 = sphi 0, %s161
      %s181 = sphi 0, %s183
      %s184 = sphi 0, %s181
      %s185 = sphi 0, %s184
      %s201 = sphi 0, %s185
    $region4: #{coembed_forward.1} parent=1 // loop_header_branch
      %17 = sbr.rel (%p15) target = $region8
    $region5: #{coembed_forward.1} parent=1 // loop_body
      %s19 = ssub.s32 %s14, 1
      %s20 = ssub.s32 %s14, 2
      %s21 = sadd.s32 %s14, 1
      %s22 = ssub.s32 %s14, %s21
      %p23 = scmp.eq.s32.totalorder %s22, 0
      %s25 = sadd.s32 %s24, 1
      %s26 = scalar_select %p23, %s24, %s25
      %p29 = pneg %p23
      %p30 = scmp.eq.s32.totalorder %s14, 2
      %p31 = por %p29, %p30
      %p32 = scmp.ne.s32.totalorder %s24, %s27
      %p33 = scmp.eq.s32.totalorder %s14, 0
      %p34 = por %p32, %p33
      %p35 = scmp.ne.s32.totalorder %s24, %s27
      %p36 = scmp.eq.s32.totalorder %s19, 2
      %p37 = por %p35, %p36
      %p38 = scmp.ne.s32.totalorder %s27, %s28
      %p39 = scmp.eq.s32.totalorder %s19, 0
      %p40 = por %p38, %p39
      %p41 = scmp.ne.s32.totalorder %s27, %s28
      %p42 = scmp.eq.s32.totalorder %s20, 2
      %p43 = por %p41, %p42
      %p45 = scmp.ne.s32.totalorder %s28, %s44
      %p46 = scmp.eq.s32.totalorder %s20, 0
      %p47 = por %p45, %p46
      %s48 = ssub.s32 %s14, %s21
      %p49 = scmp.eq.s32.totalorder %s48, 0
      %s51 = sadd.s32 %s50, 1
      %s52 = scalar_select %p49, %s50, %s51
      %p55 = pneg %p49
      %p56 = scmp.eq.s32.totalorder %s14, 2
      %p57 = por %p55, %p56
      %p58 = scmp.ne.s32.totalorder %s50, %s53
      %p59 = scmp.eq.s32.totalorder %s14, 0
      %p60 = por %p58, %p59
      %p61 = scmp.ne.s32.totalorder %s50, %s53
      %p62 = scmp.eq.s32.totalorder %s19, 2
      %p63 = por %p61, %p62
      %p64 = scmp.ne.s32.totalorder %s53, %s54
      %p65 = scmp.eq.s32.totalorder %s19, 0
      %p66 = por %p64, %p65
      %p67 = scmp.ne.s32.totalorder %s53, %s54
      %p68 = scmp.eq.s32.totalorder %s20, 2
      %p69 = por %p67, %p68
      %p71 = scmp.ne.s32.totalorder %s54, %s70
      %p72 = scmp.eq.s32.totalorder %s20, 0
      %p73 = por %p71, %p72
      %s75 = sadd.s32 %s74, 1
      %p78 = scmp.eq.s32.totalorder %s14, 2
      %p79 = scmp.ne.s32.totalorder %s74, %s76
      %p80 = scmp.eq.s32.totalorder %s14, 0
      %p81 = por %p79, %p80
      %p82 = scmp.ne.s32.totalorder %s74, %s76
      %p83 = scmp.eq.s32.totalorder %s19, 2
      %p84 = por %p82, %p83
      %p85 = scmp.ne.s32.totalorder %s76, %s77
      %p86 = scmp.eq.s32.totalorder %s19, 0
      %p87 = por %p85, %p86
      %p88 = scmp.ne.s32.totalorder %s76, %s77
      %p89 = scmp.eq.s32.totalorder %s20, 2
      %p90 = por %p88, %p89
      %p92 = scmp.ne.s32.totalorder %s77, %s91
      %p93 = scmp.eq.s32.totalorder %s20, 0
      %p94 = por %p92, %p93
      %s96 = sadd.s32 %s95, 1
      %p99 = scmp.eq.s32.totalorder %s14, 2
      %p100 = scmp.ne.s32.totalorder %s95, %s97
      %p101 = scmp.eq.s32.totalorder %s14, 0
      %p102 = por %p100, %p101
      %p103 = scmp.ne.s32.totalorder %s95, %s97
      %p104 = scmp.eq.s32.totalorder %s19, 2
      %p105 = por %p103, %p104
      %p106 = scmp.ne.s32.totalorder %s97, %s98
      %p107 = scmp.eq.s32.totalorder %s19, 0
      %p108 = por %p106, %p107
      %p109 = scmp.ne.s32.totalorder %s97, %s98
      %p110 = scmp.eq.s32.totalorder %s20, 2
      %p111 = por %p109, %p110
      %p113 = scmp.ne.s32.totalorder %s98, %s112
      %p114 = scmp.eq.s32.totalorder %s20, 0
      %p115 = por %p113, %p114
      %s117 = sadd.s32 %s116, 1
      %p120 = scmp.eq.s32.totalorder %s14, 2
      %p121 = scmp.ne.s32.totalorder %s116, %s118
      %p122 = scmp.eq.s32.totalorder %s14, 0
      %p123 = por %p121, %p122
      %p124 = scmp.ne.s32.totalorder %s116, %s118
      %p125 = scmp.eq.s32.totalorder %s19, 2
      %p126 = por %p124, %p125
      %p127 = scmp.ne.s32.totalorder %s118, %s119
      %p128 = scmp.eq.s32.totalorder %s19, 0
      %p129 = por %p127, %p128
      %p130 = scmp.ne.s32.totalorder %s118, %s119
      %p131 = scmp.eq.s32.totalorder %s20, 2
      %p132 = por %p130, %p131
      %p134 = scmp.ne.s32.totalorder %s119, %s133
      %p135 = scmp.eq.s32.totalorder %s20, 0
      %p136 = por %p134, %p135
      %s138 = sadd.s32 %s137, 1
      %p141 = scmp.eq.s32.totalorder %s14, 2
      %p142 = scmp.ne.s32.totalorder %s137, %s139
      %p143 = scmp.eq.s32.totalorder %s14, 0
      %p144 = por %p142, %p143
      %p145 = scmp.ne.s32.totalorder %s137, %s139
      %p146 = scmp.eq.s32.totalorder %s19, 2
      %p147 = por %p145, %p146
      %p148 = scmp.ne.s32.totalorder %s139, %s140
      %p149 = scmp.eq.s32.totalorder %s19, 0
      %p150 = por %p148, %p149
      %p151 = scmp.ne.s32.totalorder %s139, %s140
      %p152 = scmp.eq.s32.totalorder %s20, 2
      %p153 = por %p151, %p152
      %p155 = scmp.ne.s32.totalorder %s140, %s154
      %p156 = scmp.eq.s32.totalorder %s20, 0
      %p157 = por %p155, %p156
      %s159 = sadd.s32 %s158, 1
      %p162 = scmp.eq.s32.totalorder %s14, 2
      %p163 = scmp.ne.s32.totalorder %s158, %s160
      %p164 = scmp.eq.s32.totalorder %s14, 0
      %p165 = por %p163, %p164
      %p166 = scmp.ne.s32.totalorder %s158, %s160
      %p167 = scmp.eq.s32.totalorder %s19, 2
      %p168 = por %p166, %p167
      %p169 = scmp.ne.s32.totalorder %s160, %s161
      %p170 = scmp.eq.s32.totalorder %s19, 0
      %p171 = por %p169, %p170
      %p172 = scmp.ne.s32.totalorder %s160, %s161
      %p173 = scmp.eq.s32.totalorder %s20, 2
      %p174 = por %p172, %p173
      %p176 = scmp.ne.s32.totalorder %s161, %s175
      %p177 = scmp.eq.s32.totalorder %s20, 0
      %p178 = por %p176, %p177
      %s179 = ssub.s32 %s14, %s21
      %p180 = scmp.eq.s32.totalorder %s179, 0
      %s182 = sadd.s32 %s181, 1
      %s183 = scalar_select %p180, %s181, %s182
      %p186 = pneg %p180
      %p187 = scmp.eq.s32.totalorder %s14, 2
      %p188 = por %p186, %p187
      %p189 = scmp.ne.s32.totalorder %s181, %s184
      %p190 = scmp.eq.s32.totalorder %s14, 0
      %p191 = por %p189, %p190
      %p192 = scmp.ne.s32.totalorder %s181, %s184
      %p193 = scmp.eq.s32.totalorder %s19, 2
      %p194 = por %p192, %p193
      %p195 = scmp.ne.s32.totalorder %s184, %s185
      %p196 = scmp.eq.s32.totalorder %s19, 0
      %p197 = por %p195, %p196
      %p198 = scmp.ne.s32.totalorder %s184, %s185
      %p199 = scmp.eq.s32.totalorder %s20, 2
      %p200 = por %p198, %p199
      %p202 = scmp.ne.s32.totalorder %s185, %s201
      %p203 = scmp.eq.s32.totalorder %s20, 0
      %p204 = por %p202, %p203
      %p205 = scmp.le.s32.totalorder 1, %s14
      %p206 = scmp.lt.s32.totalorder %s14, 4
      %p207 = pnand %p205, %p206
      %p208 = pneg %p207
      // Predicated region
      $region9: #{coembed_forward.1} parent=5 // pred_check
        _
      $region10: #{coembed_forward.1} parent=5 // pred_check_branch
        %210 = sbr.rel (%p207) target = $region12
      $region11: #{coembed_forward.1} parent=5 // pred_region
        %s211 = ssub.s32 %s14, 1
        // Predicated region
        $region13: #{coembed_forward.1} parent=11 // pred_check
          %p212 = pneg %p87
        $region14: #{coembed_forward.1} parent=11 // pred_check_branch
          %214 = sbr.rel (%p212) target = $region16
        $region15: #{coembed_forward.1} parent=11 // pred_region
          _
        $region16: #{coembed_forward.1} parent=11 // pred_fallthru
          _
        // Predicated region
        $region17: #{coembed_forward.1} parent=11 // pred_check
          %p215 = pneg %p108
        $region18: #{coembed_forward.1} parent=11 // pred_check_branch
          %217 = sbr.rel (%p215) target = $region20
        $region19: #{coembed_forward.1} parent=11 // pred_region
          _
        $region20: #{coembed_forward.1} parent=11 // pred_fallthru
          _
        // Predicated region
        $region21: #{coembed_forward.1} parent=11 // pred_check
          %p218 = pneg %p129
        $region22: #{coembed_forward.1} parent=11 // pred_check_branch
          %220 = sbr.rel (%p218) target = $region24
        $region23: #{coembed_forward.1} parent=11 // pred_region
          _
        $region24: #{coembed_forward.1} parent=11 // pred_fallthru
          _
        // Predicated region
        $region25: #{coembed_forward.1} parent=11 // pred_check
          %p221 = pneg %p150
        $region26: #{coembed_forward.1} parent=11 // pred_check_branch
          %223 = sbr.rel (%p221) target = $region28
        $region27: #{coembed_forward.1} parent=11 // pred_region
          %s225 = ssub.s32 384, 384
          %226 = vsyncadd [#allocation3], %s225
          %s227 = sshll.u32 [#allocation2], 4
          %s228 = int_to_ptr.vmem [resolvable:$true] %s227
          %233 = dma.hbm_to_vmem [thread:$0]  %s5, 384, %s228, [#allocation3], 128, 128, 8
        $region28: #{coembed_forward.1} parent=11 // pred_fallthru
          _
        // Predicated region
        $region29: #{coembed_forward.1} parent=11 // pred_check
          %p234 = pneg %p171
        $region30: #{coembed_forward.1} parent=11 // pred_check_branch
          %236 = sbr.rel (%p234) target = $region32
        $region31: #{coembed_forward.1} parent=11 // pred_region
          _
        $region32: #{coembed_forward.1} parent=11 // pred_fallthru
          _
      $region12: #{coembed_forward.1} parent=5 // pred_fallthru
        _
      %p237 = scmp.lt.s32.totalorder %s14, 3
      // Predicated region
      $region33: #{coembed_forward.1} parent=5 // pred_check
        %p238 = pneg %p237
      $region34: #{coembed_forward.1} parent=5 // pred_check_branch
        %240 = sbr.rel (%p238) target = $region36
      $region35: #{coembed_forward.1} parent=5 // pred_region
        // Predicated region
        $region37: #{coembed_forward.1} parent=35 // pred_check
          %p241 = pneg %p34
        $region38: #{coembed_forward.1} parent=35 // pred_check_branch
          %243 = sbr.rel (%p241) target = $region40
        $region39: #{coembed_forward.1} parent=35 // pred_region
          %p244 = scmp.lt.s32.totalorder %s14, 2
          %s245 = scalar_select %p244, %s14, 2
          %s246 = smul.addr %s245, 2
          %s247 = smul.addr %s246, 8
          %s248 = scalar_lea.vmem %s0, %s247
        $region40: #{coembed_forward.1} parent=35 // pred_fallthru
          _
        // Predicated region
        $region41: #{coembed_forward.1} parent=35 // pred_check
          %p249 = pneg %p60
        $region42: #{coembed_forward.1} parent=35 // pred_check_branch
          %251 = sbr.rel (%p249) target = $region44
        $region43: #{coembed_forward.1} parent=35 // pred_region
          %p252 = scmp.lt.s32.totalorder %s14, 2
          %s253 = scalar_select %p252, %s14, 2
          %s254 = smul.addr %s253, 2
          %s255 = smul.addr %s254, 8
          %s256 = scalar_lea.vmem %s1, %s255
        $region44: #{coembed_forward.1} parent=35 // pred_fallthru
          _
      $region36: #{coembed_forward.1} parent=5 // pred_fallthru
        _
      %p257 = scmp.le.s32.totalorder 1, %s14
      %p258 = scmp.lt.s32.totalorder %s14, 4
      %p259 = pnand %p257, %p258
      %p260 = pneg %p259
      // Predicated region
      $region45: #{coembed_forward.1} parent=5 // pred_check
        _
      $region46: #{coembed_forward.1} parent=5 // pred_check_branch
        %262 = sbr.rel (%p259) target = $region48
      $region47: #{coembed_forward.1} parent=5 // pred_region
        %s263 = ssub.s32 %s14, 1
        // Predicated region
        $region49: #{coembed_forward.1} parent=47 // pred_check
          %p264 = pneg %p150
        $region50: #{coembed_forward.1} parent=47 // pred_check_branch
          %266 = sbr.rel (%p264) target = $region52
        $region51: #{coembed_forward.1} parent=47 // pred_region
          %267 = dma.done [#allocation3], 384
        $region52: #{coembed_forward.1} parent=47 // pred_fallthru
          _
        %p268 = scmp.lt.s32.totalorder %s19, 2
        %s269 = scalar_select %p268, %s19, 2
        %s270 = smul.addr %s269, 2
        %s271 = smul.addr %s270, 8
        %s272 = scalar_lea.vmem %s0, %s271
        %p273 = pneg %p40
        %p274 = pneg %p37
        %p275 = scmp.lt.s32.totalorder %s19, 2
        %s276 = scalar_select %p275, %s19, 2
        %s277 = smul.addr %s276, 2
        %s278 = smul.addr %s277, 8
        %s279 = scalar_lea.vmem %s1, %s278
        %p280 = pneg %p66
        %p281 = pneg %p63
        %p282 = pneg %p87
        %p283 = pneg %p84
        %p284 = pneg %p108
        %p285 = pneg %p105
        %p286 = pneg %p129
        %p287 = pneg %p126
        %p288 = pneg %p150
        %p289 = pneg %p147
        %p290 = pneg %p171
        %p291 = pneg %p168
        %p292 = pneg %p197
        %p293 = pneg %p194
        %p294 = scmp.lt.s32.totalorder %s19, 2
        %s295 = scalar_select %p294, %s19, 2
        %s296 = smul.addr %s295, 8
        %s297 = scalar_lea.vmem %s7, %s296
        %p298 = scmp.lt.s32.totalorder %s19, 2
        %s299 = scalar_select %p298, %s19, 2
        %s300 = smul.addr %s299, 2
        %s301 = smul.addr %s300, 8
        %s302 = scalar_lea.vmem %s0, %s301
        %p303 = scmp.lt.s32.totalorder %s19, 2
        %s304 = scalar_select %p303, %s19, 2
        %s305 = smul.addr %s304, 2
        %s306 = smul.addr %s305, 8
        %s307 = scalar_lea.vmem %s1, %s306
        %p308 = scmp.lt.s32.totalorder %s19, 2
        %s309 = scalar_select %p308, %s19, 2
        %s310 = smul.addr %s309, 8
        %s311 = scalar_lea.vmem %s7, %s310
        %v313 = vld [vmem:[%s302] sm:$0xff]
        %v314 = vld [vmem:[%s302 + $0x8] sm:$0xff]
        %v315 = vpack.c.bf16 %v313, %v313
        %v316 = vpack.c.bf16 %v314, %v314
        %v317 = vld [vmem:[%s2] sm:$0xf]
        %v318 = vld [vmem:[%s2 + $0x4] sm:$0xf]
        %v319 = vld [vmem:[%s2 + $0x8] sm:$0xf]
        %v320 = vld [vmem:[%s2 + $0xc] sm:$0xf]
        %v321 = vld [vmem:[%s2 + $0x10] sm:$0xf]
        %v322 = vld [vmem:[%s2 + $0x14] sm:$0xf]
        %v323 = vld [vmem:[%s2 + $0x18] sm:$0xf]
        %v324 = vld [vmem:[%s2 + $0x1c] sm:$0xf]
        %v325 = vld [vmem:[%s2 + $0x20] sm:$0xf]
        %v326 = vld [vmem:[%s2 + $0x24] sm:$0xf]
        %v327 = vld [vmem:[%s2 + $0x28] sm:$0xf]
        %v328 = vld [vmem:[%s2 + $0x2c] sm:$0xf]
        %v329 = vld [vmem:[%s2 + $0x30] sm:$0xf]
        %v330 = vld [vmem:[%s2 + $0x34] sm:$0xf]
        %v331 = vld [vmem:[%s2 + $0x38] sm:$0xf]
        %v332 = vld [vmem:[%s2 + $0x3c] sm:$0xf]
        %v333 = vld [vmem:[%s2 + $0x40] sm:$0xf]
        %v334 = vld [vmem:[%s2 + $0x44] sm:$0xf]
        %v335 = vld [vmem:[%s2 + $0x48] sm:$0xf]
        %v336 = vld [vmem:[%s2 + $0x4c] sm:$0xf]
        %v337 = vld [vmem:[%s2 + $0x50] sm:$0xf]
        %v338 = vld [vmem:[%s2 + $0x54] sm:$0xf]
        %v339 = vld [vmem:[%s2 + $0x58] sm:$0xf]
        %v340 = vld [vmem:[%s2 + $0x5c] sm:$0xf]
        %v341 = vld [vmem:[%s2 + $0x60] sm:$0xf]
        %v342 = vld [vmem:[%s2 + $0x64] sm:$0xf]
        %v343 = vld [vmem:[%s2 + $0x68] sm:$0xf]
        %v344 = vld [vmem:[%s2 + $0x6c] sm:$0xf]
        %v345 = vld [vmem:[%s2 + $0x70] sm:$0xf]
        %v346 = vld [vmem:[%s2 + $0x74] sm:$0xf]
        %v347 = vld [vmem:[%s2 + $0x78] sm:$0xf]
        %v348 = vld [vmem:[%s2 + $0x7c] sm:$0xf]
        %v349 = vld [vmem:[%s3] sm:$0x1]
        %v351 = vlaneseq
        %v352 = vshrl.u32 %v351, 7
        %v353 = vsub.s32 0, %v352
        %v354 = vrot.slane %v349, %v353
        %v388 = vunpack.c.l.b16 %v317
        %v389 = vunpack.c.l.b16 %v318
        %v390 = vunpack.c.l.b16 %v319
        %v391 = vunpack.c.l.b16 %v320
        %v392 = vunpack.c.l.b16 %v321
        %v393 = vunpack.c.l.b16 %v322
        %v394 = vunpack.c.l.b16 %v323
        %v395 = vunpack.c.l.b16 %v324
        %v396 = vunpack.c.l.b16 %v325
        %v397 = vunpack.c.l.b16 %v326
        %v398 = vunpack.c.l.b16 %v327
        %v399 = vunpack.c.l.b16 %v328
        %v400 = vunpack.c.l.b16 %v329
        %v401 = vunpack.c.l.b16 %v330
        %v402 = vunpack.c.l.b16 %v331
        %v403 = vunpack.c.l.b16 %v332
        %v404 = vunpack.c.l.b16 %v333
        %v405 = vunpack.c.l.b16 %v334
        %v406 = vunpack.c.l.b16 %v335
        %v407 = vunpack.c.l.b16 %v336
        %v408 = vunpack.c.l.b16 %v337
        %v409 = vunpack.c.l.b16 %v338
        %v410 = vunpack.c.l.b16 %v339
        %v411 = vunpack.c.l.b16 %v340
        %v412 = vunpack.c.l.b16 %v341
        %v413 = vunpack.c.l.b16 %v342
        %v414 = vunpack.c.l.b16 %v343
        %v415 = vunpack.c.l.b16 %v344
        %v416 = vunpack.c.l.b16 %v345
        %v417 = vunpack.c.l.b16 %v346
        %v418 = vunpack.c.l.b16 %v347
        %v419 = vunpack.c.l.b16 %v348
        %v420 = vpack.c.b16 %v389, %v388
        %v421 = vpack.c.b16 %v391, %v390
        %v422 = vpack.c.b16 %v393, %v392
        %v423 = vpack.c.b16 %v395, %v394
        %v424 = vpack.c.b16 %v397, %v396
        %v425 = vpack.c.b16 %v399, %v398
        %v426 = vpack.c.b16 %v401, %v400
        %v427 = vpack.c.b16 %v403, %v402
        %v428 = vpack.c.b16 %v405, %v404
        %v429 = vpack.c.b16 %v407, %v406
        %v430 = vpack.c.b16 %v409, %v408
        %v431 = vpack.c.b16 %v411, %v410
        %v432 = vpack.c.b16 %v413, %v412
        %v433 = vpack.c.b16 %v415, %v414
        %v434 = vpack.c.b16 %v417, %v416
        %v435 = vpack.c.b16 %v419, %v418
        %452 = vmatprep.subr.bf16.mxu0 0
        %453 = vmatpush1.bf16.msra.mxu0 %v427
        %454 = vmatprep.subr.bf16.mxu0 0
        %455 = vmatpush1.bf16.msra.mxu0 %v426
        %456 = vmatprep.subr.bf16.mxu0 0
        %457 = vmatpush1.bf16.msra.mxu0 %v425
        %458 = vmatprep.subr.bf16.mxu0 0
        %459 = vmatpush1.bf16.msra.mxu0 %v424
        %460 = vmatprep.subr.bf16.mxu0 0
        %461 = vmatpush1.bf16.msra.mxu0 %v423
        %462 = vmatprep.subr.bf16.mxu0 0
        %463 = vmatpush1.bf16.msra.mxu0 %v422
        %464 = vmatprep.subr.bf16.mxu0 0
        %465 = vmatpush1.bf16.msra.mxu0 %v421
        %466 = vmatprep.subr.bf16.mxu0 0
        %467 = vmatpush1.bf16.msra.mxu0 %v420
        %468 = vmatprep.subr.bf16.mxu0 0
        %469 = vmatpush2.bf16.msra.mxu0 %v435
        %470 = vmatprep.subr.bf16.mxu0 0
        %471 = vmatpush2.bf16.msra.mxu0 %v434
        %472 = vmatprep.subr.bf16.mxu0 0
        %473 = vmatpush2.bf16.msra.mxu0 %v433
        %474 = vmatprep.subr.bf16.mxu0 0
        %475 = vmatpush2.bf16.msra.mxu0 %v432
        %476 = vmatprep.subr.bf16.mxu0 0
        %477 = vmatpush2.bf16.msra.mxu0 %v431
        %478 = vmatprep.subr.bf16.mxu0 0
        %479 = vmatpush2.bf16.msra.mxu0 %v430
        %480 = vmatprep.subr.bf16.mxu0 0
        %481 = vmatpush2.bf16.msra.mxu0 %v429
        %482 = vmatprep.subr.bf16.mxu0 0
        %483 = vmatpush2.bf16.msra.mxu0 %v428
        %484 = vmatprep.mubr.bf16.mxu0 %v316
        %485 = vmatmul.mubr.bf16.gmra.mxu0 %v315
        %v486 = vpop.f32.mrf.mxu0
        %v487 = vadd.f32 %v354, %v486
        %v488 = vpop.f32.mrf.mxu0
        %v489 = vpop.f32.mrf.mxu0
        %v490 = vpop.f32.mrf.mxu0
        %491 = vdwg.mxu0
        %v492 = vmax.f32 %v487, 0.0
        %v493 = vld [vmem:[%s307] sm:$0xff]
        %v494 = vld [vmem:[%s307 + $0x8] sm:$0xff]
        %v495 = vcvt.f32.s32.to.zero.pseudo %v494
        %v496 = vlaneseq
        %v497 = vand.u32 %v496, 127
        %v498 = vlaneseq
        %v499 = vshrl.u32 %v498, 7
        %v500 = vsub.s32 0, %v499
        %v501 = vrot.slane %v495, %v500
        %503 = vbcast.lane.b32.xlu0 %v501, 256
        %v504 = vpop.permute.xlu0 %503
        %s506 = sor.u32 256, 8
        %507 = vbcast.lane.b32.xlu0 %v501, %s506
        %v508 = vpop.permute.xlu0 %507
        %v509 = vlaneseq
        %v510 = vshrl.u32 %v509, 7
        %v511 = vsub.s32 1, %v510
        %v512 = vrot.slane %v495, %v511
        %514 = vbcast.lane.b32.xlu0 %v512, 256
        %v515 = vpop.permute.xlu0 %514
        %s517 = sor.u32 256, 8
        %518 = vbcast.lane.b32.xlu0 %v512, %s517
        %v519 = vpop.permute.xlu0 %518
        %v520 = vlaneseq
        %v521 = vshrl.u32 %v520, 7
        %v522 = vsub.s32 2, %v521
        %v523 = vrot.slane %v495, %v522
        %525 = vbcast.lane.b32.xlu0 %v523, 256
        %v526 = vpop.permute.xlu0 %525
        %s528 = sor.u32 256, 8
        %529 = vbcast.lane.b32.xlu0 %v523, %s528
        %v530 = vpop.permute.xlu0 %529
        %v531 = vlaneseq
        %v532 = vshrl.u32 %v531, 7
        %v533 = vsub.s32 3, %v532
        %v534 = vrot.slane %v495, %v533
        %536 = vbcast.lane.b32.xlu0 %v534, 256
        %v537 = vpop.permute.xlu0 %536
        %s539 = sor.u32 256, 8
        %540 = vbcast.lane.b32.xlu0 %v534, %s539
        %v541 = vpop.permute.xlu0 %540
        %v542 = vlaneseq
        %v543 = vshrl.u32 %v542, 7
        %v544 = vsub.s32 4, %v543
        %v545 = vrot.slane %v495, %v544
        %547 = vbcast.lane.b32.xlu0 %v545, 256
        %v548 = vpop.permute.xlu0 %547
        %s550 = sor.u32 256, 8
        %551 = vbcast.lane.b32.xlu0 %v545, %s550
        %v552 = vpop.permute.xlu0 %551
        %v553 = vlaneseq
        %v554 = vshrl.u32 %v553, 7
        %v555 = vsub.s32 5, %v554
        %v556 = vrot.slane %v495, %v555
        %558 = vbcast.lane.b32.xlu0 %v556, 256
        %v559 = vpop.permute.xlu0 %558
        %s561 = sor.u32 256, 8
        %562 = vbcast.lane.b32.xlu0 %v556, %s561
        %v563 = vpop.permute.xlu0 %562
        %v564 = vlaneseq
        %v565 = vshrl.u32 %v564, 7
        %v566 = vsub.s32 6, %v565
        %v567 = vrot.slane %v495, %v566
        %569 = vbcast.lane.b32.xlu0 %v567, 256
        %v570 = vpop.permute.xlu0 %569
        %s572 = sor.u32 256, 8
        %573 = vbcast.lane.b32.xlu0 %v567, %s572
        %v574 = vpop.permute.xlu0 %573
        %v575 = vlaneseq
        %v576 = vshrl.u32 %v575, 7
        %v577 = vsub.s32 7, %v576
        %v578 = vrot.slane %v495, %v577
        %580 = vbcast.lane.b32.xlu0 %v578, 256
        %v581 = vpop.permute.xlu0 %580
        %s583 = sor.u32 256, 8
        %584 = vbcast.lane.b32.xlu0 %v578, %s583
        %v585 = vpop.permute.xlu0 %584
        %vm586 = vcmp.eq.s32.totalorder %v504, %v497
        %vm587 = vcmp.eq.s32.totalorder %v508, %v497
        %vm588 = vcmp.eq.s32.totalorder %v515, %v497
        %vm589 = vcmp.eq.s32.totalorder %v519, %v497
        %vm590 = vcmp.eq.s32.totalorder %v526, %v497
        %vm591 = vcmp.eq.s32.totalorder %v530, %v497
        %vm592 = vcmp.eq.s32.totalorder %v537, %v497
        %vm593 = vcmp.eq.s32.totalorder %v541, %v497
        %vm594 = vcmp.eq.s32.totalorder %v548, %v497
        %vm595 = vcmp.eq.s32.totalorder %v552, %v497
        %vm596 = vcmp.eq.s32.totalorder %v559, %v497
        %vm597 = vcmp.eq.s32.totalorder %v563, %v497
        %vm598 = vcmp.eq.s32.totalorder %v570, %v497
        %vm599 = vcmp.eq.s32.totalorder %v574, %v497
        %vm600 = vcmp.eq.s32.totalorder %v581, %v497
        %vm601 = vcmp.eq.s32.totalorder %v585, %v497
        %v602 = vsel %vm586, 1, 0
        %v603 = vsel %vm587, 1, 0
        %v604 = vsel %vm588, 1, 0
        %v605 = vsel %vm589, 1, 0
        %v606 = vsel %vm590, 1, 0
        %v607 = vsel %vm591, 1, 0
        %v608 = vsel %vm592, 1, 0
        %v609 = vsel %vm593, 1, 0
        %v610 = vsel %vm594, 1, 0
        %v611 = vsel %vm595, 1, 0
        %v612 = vsel %vm596, 1, 0
        %v613 = vsel %vm597, 1, 0
        %v614 = vsel %vm598, 1, 0
        %v615 = vsel %vm599, 1, 0
        %v616 = vsel %vm600, 1, 0
        %v617 = vsel %vm601, 1, 0
        %v618 = vcvt.s32.f32 %v602
        %v619 = vcvt.s32.f32 %v603
        %v620 = vcvt.s32.f32 %v604
        %v621 = vcvt.s32.f32 %v605
        %v622 = vcvt.s32.f32 %v606
        %v623 = vcvt.s32.f32 %v607
        %v624 = vcvt.s32.f32 %v608
        %v625 = vcvt.s32.f32 %v609
        %v626 = vcvt.s32.f32 %v610
        %v627 = vcvt.s32.f32 %v611
        %v628 = vcvt.s32.f32 %v612
        %v629 = vcvt.s32.f32 %v613
        %v630 = vcvt.s32.f32 %v614
        %v631 = vcvt.s32.f32 %v615
        %v632 = vcvt.s32.f32 %v616
        %v633 = vcvt.s32.f32 %v617
        %vm634 = vcmask 179200
        %v635 = vsel %vm634, %v618, 0.0
        %v636 = vsel %vm634, %v619, 0.0
        %v637 = vadd.f32 %v635, %v636
        %v638 = vrot.slane %v637, 4
        %v639 = vadd.f32 %v637, %v638
        %v640 = vrot.slane %v639, 2
        %v641 = vadd.f32 %v639, %v640
        %v642 = vrot.slane %v641, 1
        %v643 = vadd.f32 %v641, %v642
        %v644 = vsel %vm634, %v620, 0.0
        %v645 = vsel %vm634, %v621, 0.0
        %v646 = vadd.f32 %v644, %v645
        %v647 = vrot.slane %v646, 4
        %v648 = vadd.f32 %v646, %v647
        %v649 = vrot.slane %v648, 2
        %v650 = vadd.f32 %v648, %v649
        %v651 = vrot.slane %v650, 1
        %v652 = vadd.f32 %v650, %v651
        %v653 = vsel %vm634, %v622, 0.0
        %v654 = vsel %vm634, %v623, 0.0
        %v655 = vadd.f32 %v653, %v654
        %v656 = vrot.slane %v655, 4
        %v657 = vadd.f32 %v655, %v656
        %v658 = vrot.slane %v657, 2
        %v659 = vadd.f32 %v657, %v658
        %v660 = vrot.slane %v659, 1
        %v661 = vadd.f32 %v659, %v660
        %v662 = vsel %vm634, %v624, 0.0
        %v663 = vsel %vm634, %v625, 0.0
        %v664 = vadd.f32 %v662, %v663
        %v665 = vrot.slane %v664, 4
        %v666 = vadd.f32 %v664, %v665
        %v667 = vrot.slane %v666, 2
        %v668 = vadd.f32 %v666, %v667
        %v669 = vrot.slane %v668, 1
        %v670 = vadd.f32 %v668, %v669
        %v671 = vsel %vm634, %v626, 0.0
        %v672 = vsel %vm634, %v627, 0.0
        %v673 = vadd.f32 %v671, %v672
        %v674 = vrot.slane %v673, 4
        %v675 = vadd.f32 %v673, %v674
        %v676 = vrot.slane %v675, 2
        %v677 = vadd.f32 %v675, %v676
        %v678 = vrot.slane %v677, 1
        %v679 = vadd.f32 %v677, %v678
        %v680 = vsel %vm634, %v628, 0.0
        %v681 = vsel %vm634, %v629, 0.0
        %v682 = vadd.f32 %v680, %v681
        %v683 = vrot.slane %v682, 4
        %v684 = vadd.f32 %v682, %v683
        %v685 = vrot.slane %v684, 2
        %v686 = vadd.f32 %v684, %v685
        %v687 = vrot.slane %v686, 1
        %v688 = vadd.f32 %v686, %v687
        %v689 = vsel %vm634, %v630, 0.0
        %v690 = vsel %vm634, %v631, 0.0
        %v691 = vadd.f32 %v689, %v690
        %v692 = vrot.slane %v691, 4
        %v693 = vadd.f32 %v691, %v692
        %v694 = vrot.slane %v693, 2
        %v695 = vadd.f32 %v693, %v694
        %v696 = vrot.slane %v695, 1
        %v697 = vadd.f32 %v695, %v696
        %v698 = vsel %vm634, %v632, 0.0
        %v699 = vsel %vm634, %v633, 0.0
        %v700 = vadd.f32 %v698, %v699
        %v701 = vrot.slane %v700, 4
        %v702 = vadd.f32 %v700, %v701
        %v703 = vrot.slane %v702, 2
        %v704 = vadd.f32 %v702, %v703
        %v705 = vrot.slane %v704, 1
        %v706 = vadd.f32 %v704, %v705
        %v707 = vmul.f32 %v643, 0.0625
        %v708 = vmul.f32 %v652, 0.0625
        %v709 = vmul.f32 %v661, 0.0625
        %v710 = vmul.f32 %v670, 0.0625
        %v711 = vmul.f32 %v679, 0.0625
        %v712 = vmul.f32 %v688, 0.0625
        %v713 = vmul.f32 %v697, 0.0625
        %v714 = vmul.f32 %v706, 0.0625
        %v715 = vpack.c.bf16 %v493, %v493
        %v716 = vld [vmem:[%s4] sm:$0xf]
        %v717 = vld [vmem:[%s4 + $0x4] sm:$0xf]
        %v718 = vld [vmem:[%s4 + $0x8] sm:$0xf]
        %v719 = vld [vmem:[%s4 + $0xc] sm:$0xf]
        %v720 = vld [vmem:[%s4 + $0x10] sm:$0xf]
        %v721 = vld [vmem:[%s4 + $0x14] sm:$0xf]
        %v722 = vld [vmem:[%s4 + $0x18] sm:$0xf]
        %v723 = vld [vmem:[%s4 + $0x1c] sm:$0xf]
        %v724 = vld [vmem:[%s4 + $0x20] sm:$0xf]
        %v725 = vld [vmem:[%s4 + $0x24] sm:$0xf]
        %v726 = vld [vmem:[%s4 + $0x28] sm:$0xf]
        %v727 = vld [vmem:[%s4 + $0x2c] sm:$0xf]
        %v728 = vld [vmem:[%s4 + $0x30] sm:$0xf]
        %v729 = vld [vmem:[%s4 + $0x34] sm:$0xf]
        %v730 = vld [vmem:[%s4 + $0x38] sm:$0xf]
        %v731 = vld [vmem:[%s4 + $0x3c] sm:$0xf]
        %v732 = vld [vmem:[#allocation2] sm:$0xff]
        %v733 = vld [vmem:[#allocation2 + $0x8] sm:$0xff]
        %v734 = vld [vmem:[#allocation2 + $0x10] sm:$0x3f]
        %vm743 = vcmask 1041409
        %v744 = vsel %vm743, %v708, %v707
        %vm745 = vcmask 1042434
        %v746 = vsel %vm745, %v709, %v744
        %vm747 = vcmask 1043459
        %v748 = vsel %vm747, %v710, %v746
        %vm749 = vcmask 1044484
        %v750 = vsel %vm749, %v711, %v748
        %vm751 = vcmask 1045509
        %v752 = vsel %vm751, %v712, %v750
        %vm753 = vcmask 1046534
        %v754 = vsel %vm753, %v713, %v752
        %vm755 = vcmask 1047559
        %v756 = vsel %vm755, %v714, %v754
        %v757 = vsel %vm634, %v756, 0
        %vm759 = vcmask 1045504
        %v761 = vsel %vm759, %v734, 0
        %763 = vmatprep.subr.mxu0 0.0
        %764 = vmatpush1.msra.mxu0 0.0
        %765 = vmatprep.subr.mxu0 0.0
        %766 = vmatpush1.msra.mxu0 0.0
        %767 = vmatprep.subr.mxu0 0.0
        %768 = vmatpush1.msra.mxu0 0.0
        %769 = vmatprep.subr.mxu0 0.0
        %770 = vmatpush1.msra.mxu0 0.0
        %771 = vmatprep.subr.mxu0 0.0
        %772 = vmatpush1.msra.mxu0 0.0
        %773 = vmatprep.subr.mxu0 0.0
        %774 = vmatpush1.msra.mxu0 0.0
        %775 = vmatprep.subr.mxu0 0.0
        %776 = vmatpush1.msra.mxu0 0.0
        %777 = vmatprep.subr.mxu0 0.0
        %778 = vmatpush1.msra.mxu0 0.0
        %779 = vmatprep.subr.mxu0 0.0
        %780 = vmatpush1.msra.mxu0 0.0
        %781 = vmatprep.subr.mxu0 0.0
        %782 = vmatpush1.msra.mxu0 0.0
        %783 = vmatprep.subr.mxu0 0.0
        %784 = vmatpush1.msra.mxu0 0.0
        %785 = vmatprep.subr.mxu0 0.0
        %786 = vmatpush1.msra.mxu0 0.0
        %787 = vmatprep.subr.mxu0 0.0
        %788 = vmatpush1.msra.mxu0 0.0
        %789 = vmatprep.subr.mxu0 0.0
        %790 = vmatpush1.msra.mxu0 %v761
        %791 = vmatprep.subr.mxu0 0.0
        %792 = vmatpush1.msra.mxu0 %v733
        %793 = vmatprep.subr.mxu0 0.0
        %794 = vmatpush1.msra.mxu0 %v732
        %795 = vmatprep.subr.mxu0 0.0
        %796 = vmatpush2.msra.mxu0 0.0
        %797 = vmatprep.subr.mxu0 0.0
        %798 = vmatpush2.msra.mxu0 0.0
        %799 = vmatprep.subr.mxu0 0.0
        %800 = vmatpush2.msra.mxu0 0.0
        %801 = vmatprep.subr.mxu0 0.0
        %802 = vmatpush2.msra.mxu0 0.0
        %803 = vmatprep.subr.mxu0 0.0
        %804 = vmatpush2.msra.mxu0 0.0
        %805 = vmatprep.subr.mxu0 0.0
        %806 = vmatpush2.msra.mxu0 0.0
        %807 = vmatprep.subr.mxu0 0.0
        %808 = vmatpush2.msra.mxu0 0.0
        %809 = vmatprep.subr.mxu0 0.0
        %810 = vmatpush2.msra.mxu0 0.0
        %811 = vmatprep.subr.mxu0 0.0
        %812 = vmatpush2.msra.mxu0 0.0
        %813 = vmatprep.subr.mxu0 0.0
        %814 = vmatpush2.msra.mxu0 0.0
        %815 = vmatprep.subr.mxu0 0.0
        %816 = vmatpush2.msra.mxu0 0.0
        %817 = vmatprep.subr.mxu0 0.0
        %818 = vmatpush2.msra.mxu0 0.0
        %819 = vmatprep.subr.mxu0 0.0
        %820 = vmatpush2.msra.mxu0 0.0
        %821 = vmatprep.subr.mxu0 0.0
        %822 = vmatpush2.msra.mxu0 0.0
        %823 = vmatprep.subr.mxu0 0.0
        %824 = vmatpush2.msra.mxu0 0.0
        %825 = vmatprep.subr.mxu0 0.0
        %826 = vmatpush2.msra.mxu0 0.0
        %827 = vmatprep.mubr.f32.mxu0 0.0
        %828 = vmatmul.mubr.f32.gmra.mxu0 %v757
        %v829 = vpop.f32.mrf.mxu0
        %v830 = vadd.f32 0.0, %v829
        %v831 = vpop.f32.mrf.mxu0
        %832 = vdwg.mxu0
        %v849 = vunpack.c.l.b16 %v716
        %v850 = vunpack.c.l.b16 %v717
        %v851 = vunpack.c.l.b16 %v718
        %v852 = vunpack.c.l.b16 %v719
        %v853 = vunpack.c.l.b16 %v720
        %v854 = vunpack.c.l.b16 %v721
        %v855 = vunpack.c.l.b16 %v722
        %v856 = vunpack.c.l.b16 %v723
        %v857 = vunpack.c.l.b16 %v724
        %v858 = vunpack.c.l.b16 %v725
        %v859 = vunpack.c.l.b16 %v726
        %v860 = vunpack.c.l.b16 %v727
        %v861 = vunpack.c.l.b16 %v728
        %v862 = vunpack.c.l.b16 %v729
        %v863 = vunpack.c.l.b16 %v730
        %v864 = vunpack.c.l.b16 %v731
        %v865 = vpack.c.b16 %v850, %v849
        %v866 = vpack.c.b16 %v852, %v851
        %v867 = vpack.c.b16 %v854, %v853
        %v868 = vpack.c.b16 %v856, %v855
        %v869 = vpack.c.b16 %v858, %v857
        %v870 = vpack.c.b16 %v860, %v859
        %v871 = vpack.c.b16 %v862, %v861
        %v872 = vpack.c.b16 %v864, %v863
        %881 = vmatprep.subr.bf16.mxu0 0
        %882 = vmatpush1.bf16.msra.mxu0 %v872
        %883 = vmatprep.subr.bf16.mxu0 0
        %884 = vmatpush1.bf16.msra.mxu0 %v871
        %885 = vmatprep.subr.bf16.mxu0 0
        %886 = vmatpush1.bf16.msra.mxu0 %v870
        %887 = vmatprep.subr.bf16.mxu0 0
        %888 = vmatpush1.bf16.msra.mxu0 %v869
        %889 = vmatprep.subr.bf16.mxu0 0
        %890 = vmatpush1.bf16.msra.mxu0 %v868
        %891 = vmatprep.subr.bf16.mxu0 0
        %892 = vmatpush1.bf16.msra.mxu0 %v867
        %893 = vmatprep.subr.bf16.mxu0 0
        %894 = vmatpush1.bf16.msra.mxu0 %v866
        %895 = vmatprep.subr.bf16.mxu0 0
        %896 = vmatpush1.bf16.msra.mxu0 %v865
        %897 = vmatprep.subr.bf16.mxu0 0
        %898 = vmatpush2.bf16.msra.mxu0 0
        %899 = vmatprep.subr.bf16.mxu0 0
        %900 = vmatpush2.bf16.msra.mxu0 0
        %901 = vmatprep.subr.bf16.mxu0 0
        %902 = vmatpush2.bf16.msra.mxu0 0
        %903 = vmatprep.subr.bf16.mxu0 0
        %904 = vmatpush2.bf16.msra.mxu0 0
        %905 = vmatprep.subr.bf16.mxu0 0
        %906 = vmatpush2.bf16.msra.mxu0 0
        %907 = vmatprep.subr.bf16.mxu0 0
        %908 = vmatpush2.bf16.msra.mxu0 0
        %909 = vmatprep.subr.bf16.mxu0 0
        %910 = vmatpush2.bf16.msra.mxu0 0
        %911 = vmatprep.subr.bf16.mxu0 0
        %912 = vmatpush2.bf16.msra.mxu0 0
        %913 = vmatprep.mubr.bf16.mxu0 0
        %914 = vmatmul.mubr.bf16.gmra.mxu0 %v715
        %v915 = vpop.f32.mrf.mxu0
        %v916 = vadd.f32 %v830, %v915
        %v917 = vpop.f32.mrf.mxu0
        %v918 = vpop.f32.mrf.mxu0
        %v919 = vpop.f32.mrf.mxu0
        %920 = vdwg.mxu0
        %v921 = vld [vmem:[%s6] sm:$0x1]
        %v923 = vlaneseq
        %v924 = vshrl.u32 %v923, 7
        %v925 = vsub.s32 0, %v924
        %v926 = vrot.slane %v921, %v925
        %v928 = vadd.f32 %v916, %v926
        %v929 = vmax.f32 %v928, 0.0
        %v930 = vmul.f32 %v492, %v929
        %931 = vadd.xlane.f32.xlu0 %v930
        %v932 = vpop.xlane.xlu0 %931
        %v933 = vmul.f32 %v492, %v492
        %934 = vadd.xlane.f32.xlu0 %v933
        %v935 = vpop.xlane.xlu0 %934
        %v936 = vmul.f32 %v929, %v929
        %937 = vadd.xlane.f32.xlu0 %v936
        %v938 = vpop.xlane.xlu0 %937
        %v939 = vmax.f32 %v935, 1e-16
        %v940 = vrsqrt.pop %v939
        %v941 = vmax.f32 %v938, 1e-16
        %v942 = vrsqrt.pop %v941
        %v943 = vmul.f32 %v940, %v942
        %v944 = vmul.f32 %v932, %v943
        %vm945 = vcmask 7168
        %946 = vst.msk [vmem:[%s311] sm:$0xff] %vm945, %v944
        %p947 = scmp.lt.s32.totalorder %s19, 2
        %s948 = scalar_select %p947, %s19, 2
        %s949 = smul.addr %s948, 8
        %s950 = scalar_lea.vmem %s7, %s949
        // Predicated region
        $region53: #{coembed_forward.1} parent=47 // pred_check
          %p951 = pneg %p194
        $region54: #{coembed_forward.1} parent=47 // pred_check_branch
          %953 = sbr.rel (%p951) target = $region56
        $region55: #{coembed_forward.1} parent=47 // pred_region
          _
        $region56: #{coembed_forward.1} parent=47 // pred_fallthru
          _
      $region48: #{coembed_forward.1} parent=5 // pred_fallthru
        _
      %p954 = scmp.le.s32.totalorder 2, %s14
      // Predicated region
      $region57: #{coembed_forward.1} parent=5 // pred_check
        %p955 = pneg %p954
      $region58: #{coembed_forward.1} parent=5 // pred_check_branch
        %957 = sbr.rel (%p955) target = $region60
      $region59: #{coembed_forward.1} parent=5 // pred_region
        %s958 = ssub.s32 %s14, 2
        // Predicated region
        $region61: #{coembed_forward.1} parent=59 // pred_check
          %p959 = pneg %p200
        $region62: #{coembed_forward.1} parent=59 // pred_check_branch
          %961 = sbr.rel (%p959) target = $region64
        $region63: #{coembed_forward.1} parent=59 // pred_region
          %p962 = scmp.lt.s32.totalorder %s20, 2
          %s963 = scalar_select %p962, %s20, 2
          %s964 = smul.addr %s963, 8
          %s965 = scalar_lea.vmem %s7, %s964
        $region64: #{coembed_forward.1} parent=59 // pred_fallthru
          _
      $region60: #{coembed_forward.1} parent=5 // pred_fallthru
        _
    $region6: #{coembed_forward.1} parent=1 // loop_footer
      %s18 = sadd.s32 1, %s14
    $region7: #{coembed_forward.1} parent=1 // loop_footer_branch
      %13 = sbr.rel target = $region3
    $region8: #{coembed_forward.1} parent=1 // loop_exit
      _
    %966 = vsyncpa [#allocation3], 1
    %s967 = scalar_lea.sflag [#allocation3], 1
    %968 = vsyncpa %s967, 1

</llo_original>
